<compile_context>
chip_gen: v5e
topology: v5e:2x2
jax: 0.10.0
libtpu: 0.0.40
codegen_flags: <defaults>
</compile_context>

<pallas_src>
import functools

import jax
import jax.numpy as jnp
from jax.experimental import pallas as pl
from jax.experimental.pallas import tpu as pltpu

LEAKY_SLOPE = 0.01   # torch.nn.LeakyReLU default
BN_EPS = 1e-5        # torch.nn.BatchNorm2d default
LANE = 128


def _round_up(x, m):
    return (x + m - 1) // m * m


def _vmem_budget_bytes():
    """Per-generation VMEM budget with headroom for Mosaic scratch / semaphores."""
    try:
        cap = int(pltpu.get_tpu_info().vmem_capacity_bytes)
    except Exception:
        cap = 64 << 20                      # conservative fallback (v7x per-core VMEM)
    # v7x (64 MiB) -> ~48 MiB;  v5e/v6e (128 MiB) -> 100 MiB.
    return max(min(cap - (16 << 20), 100 << 20), 32 << 20)


def _auto_tile_m(m_real, kp, cp, out_lanes, in_itemsize, budget_bytes):
    """Largest tile_m (multiple of 256) whose double-buffered pipeline fits the VMEM budget."""
    # Per tile_m row: double-buffered patch tile (in) + double-buffered f32 output tile (out)
    # + one f32 conv temporary.  Fixed: weight tile (x2 buffers), scale/shift, accumulators,
    # plus generic headroom.
    per_row = 2 * kp * in_itemsize + 2 * out_lanes * 4 + cp * 4
    fixed = 2 * kp * cp * in_itemsize + 16 * cp * 4 + (4 << 20)
    avail = max(budget_bytes - fixed, 1 << 20)
    tm = int(avail // per_row)
    tm = max((tm // 256) * 256, 256)
    tm = min(tm, 16384)                                   # diminishing returns beyond this
    tm = min(tm, max(256, _round_up(m_real, 256)))        # don't exceed the real problem
    return tm


# ----------------------------------------------------------------------------
# Phase 1: conv-as-matmul, per-channel sum / sum-of-squares partials only.
# No conv writeback to HBM.
# ----------------------------------------------------------------------------
def _conv_stats_kernel(p_ref, w_ref, sum_ref, sumsq_ref):
    """p_ref: (tm, Kp); w_ref: (Kp, Cp); sum_ref/sumsq_ref: (1, 1, Cp) per-core partials
    resident in VMEM across the inner ("arbitrary") grid axis."""
    i = pl.program_id(1)

    conv = jnp.dot(p_ref[...], w_ref[...], preferred_element_type=jnp.float32)

    @pl.when(i == 0)
    def _():
        sum_ref[...] = jnp.zeros_like(sum_ref)
        sumsq_ref[...] = jnp.zeros_like(sumsq_ref)

    # Padded rows (zero patches) contribute exactly 0 to both sums.
    # NOTE: E[x^2] - mean^2 is cancellation-prone for |mean| >> std; partials are per-core and
    # guarded with max(var, 0) downstream.
    sum_ref[...] += jnp.sum(conv, axis=0, keepdims=True).reshape(1, 1, -1)
    sumsq_ref[...] += jnp.sum(conv * conv, axis=0, keepdims=True).reshape(1, 1, -1)


# ----------------------------------------------------------------------------
# Phase 2: recompute conv in VMEM, apply hoisted BN scale/shift + LeakyReLU,
# store only the real out_c lanes.
# ----------------------------------------------------------------------------
def _conv_bn_lrelu_kernel(p_ref, w_ref, scale_ref, shift_ref, o_ref, *, out_c):
    conv = jnp.dot(p_ref[...], w_ref[...], preferred_element_type=jnp.float32)
    y = conv * scale_ref[...] + shift_ref[...]
    y = jnp.where(y > 0, y, LEAKY_SLOPE * y)
    o_ref[...] = y[:, :out_c].astype(o_ref.dtype)


def _im2col(x_nchw, kh, kw, stride, padding):
    """(N*Ho*Wo, C*kh*kw) patch matrix with (C, kh, kw) feature order
    (matches PyTorch conv weight layout (out_c, in_c, kh, kw))."""
    n, c, h, w = x_nchw.shape
    sh = sw = stride
    ph = pw = padding
    ho = (h + 2 * ph - kh) // sh + 1
    wo = (w + 2 * pw - kw) // sw + 1
    xp = jnp.pad(x_nchw, ((0, 0), (0, 0), (ph, ph), (pw, pw)))
    cols = []
    for i in range(kh):
        for j in range(kw):
            cols.append(xp[:, :, i:i + sh * ho:sh, j:j + sw * wo:sw])  # (N,C,Ho,Wo)
    patches = jnp.stack(cols, axis=2)                     # (N, C, kh*kw, Ho, Wo)
    patches = patches.reshape(n, c * kh * kw, ho, wo)     # (N, C*kh*kw, Ho, Wo)
    patches = patches.transpose(0, 2, 3, 1)               # (N, Ho, Wo, C*kh*kw)
    return patches.reshape(n * ho * wo, c * kh * kw), (n, ho, wo)


@functools.partial(jax.jit,
                   static_argnames=("stride", "padding", "tile_m", "mxu_dtype", "nhwc_out"))
def conv_block_forward(x_nchw, weight, bias, gamma, beta, *,
                       stride, padding, tile_m=None, mxu_dtype=jnp.bfloat16,
                       nhwc_out=False):
    """x_nchw: (N, in_c, H, W); weight: (out_c, in_c, kh, kw).
    `bias` is accepted for API parity but mathematically cancelled by the train-mode
    BatchNorm mean subtraction, so it is not added in the kernel."""
    del bias
    out_c, in_c, kh, kw = weight.shape
    mxu_dtype = jnp.dtype(mxu_dtype)
    in_itemsize = mxu_dtype.itemsize
    sublane = 16 if in_itemsize < 4 else 8       # sub-32-bit dtypes pack 2x along sublanes

    # Cast BEFORE im2col so the ~kh*kw x expanded patch materialization is already narrow.
    patches, (n, ho, wo) = _im2col(x_nchw.astype(mxu_dtype), kh, kw, stride, padding)
    m_real, k_real = patches.shape

    kp = _round_up(k_real, LANE)        # lane-pad the contraction dim
    cp = _round_up(out_c, LANE)         # lane-pad the channel dim for the MXU feed only

    vmem_limit = _vmem_budget_bytes()
    if tile_m is None:
        tm = _auto_tile_m(m_real, kp, cp, out_c, in_itemsize, vmem_limit)
    else:
        tm = _round_up(int(tile_m), sublane)

    grid_m = pl.cdiv(m_real, tm)
    nc = 2 if grid_m >= 2 else 1        # per-core stat partials (megacore phase 1 on v7x)
    gm = pl.cdiv(grid_m, nc)
    grid_m = nc * gm
    mp = grid_m * tm

    patches = jnp.pad(patches, ((0, mp - m_real), (0, kp - k_real)))
    w_mat = weight.reshape(out_c, k_real).T.astype(mxu_dtype)          # (K, out_c)
    w_mat = jnp.pad(w_mat, ((0, kp - k_real), (0, cp - out_c)))

    # ---------------- Phase 1: global BN statistics (per-core partials) -------------
    csum_p, csumsq_p = pl.pallas_call(
        _conv_stats_kernel,
        grid=(nc, gm),
        in_specs=[
            pl.BlockSpec((tm, kp), lambda c, i: (c * gm + i, 0)),
            pl.BlockSpec((kp, cp), lambda c, i: (0, 0)),
        ],
        out_specs=(
            pl.BlockSpec((1, 1, cp), lambda c, i: (c, 0, 0)),   # resident per-core partials
            pl.BlockSpec((1, 1, cp), lambda c, i: (c, 0, 0)),
        ),
        out_shape=(
            jax.ShapeDtypeStruct((nc, 1, cp), jnp.float32),
            jax.ShapeDtypeStruct((nc, 1, cp), jnp.float32),
        ),
        compiler_params=pltpu.CompilerParams(
            dimension_semantics=("parallel", "arbitrary"),
            vmem_limit_bytes=vmem_limit),
        cost_estimate=pl.CostEstimate(
            flops=2 * mp * kp * cp + 4 * mp * cp,
            transcendentals=0,
            bytes_accessed=(mp * kp + kp * cp) * in_itemsize + 2 * nc * cp * 4),
    )(patches, w_mat)

    # ---------------- Tiny (Cp,) reduction + hoisted BN scale/shift -----------------
    inv_m = 1.0 / float(m_real)
    csum = jnp.sum(csum_p[:, 0, :], axis=0)
    csumsq = jnp.sum(csumsq_p[:, 0, :], axis=0)
    mean = csum * inv_m
    var = jnp.maximum(csumsq * inv_m - mean * mean, 0.0)   # guard tiny negative cancellation
    inv_std = jax.lax.rsqrt(var + BN_EPS)
    g_pad = jnp.pad(gamma.astype(jnp.float32), (0, cp - out_c))
    b_pad = jnp.pad(beta.astype(jnp.float32), (0, cp - out_c))
    scale = (g_pad * inv_std).reshape(1, cp)
    shift = (b_pad - g_pad * inv_std * mean).reshape(1, cp)

    # ---------------- Phase 2: conv recompute + BN + LeakyReLU (parallel) -----------
    out = pl.pallas_call(
        functools.partial(_conv_bn_lrelu_kernel, out_c=out_c),
        grid=(grid_m,),
        in_specs=[
            pl.BlockSpec((tm, kp), lambda i: (i, 0)),
            pl.BlockSpec((kp, cp), lambda i: (0, 0)),
            pl.BlockSpec((1, cp), lambda i: (0, 0)),
            pl.BlockSpec((1, cp), lambda i: (0, 0)),
        ],
        out_specs=pl.BlockSpec((tm, out_c), lambda i: (i, 0)),   # only real channels hit HBM
        out_shape=jax.ShapeDtypeStruct((mp, out_c), jnp.float32),
        compiler_params=pltpu.CompilerParams(
            dimension_semantics=("parallel",),
            vmem_limit_bytes=vmem_limit),
        cost_estimate=pl.CostEstimate(
            flops=2 * mp * kp * cp + 6 * mp * cp,
            transcendentals=0,
            bytes_accessed=(mp * kp + kp * cp) * in_itemsize + 2 * cp * 4
                           + mp * out_c * 4),
    )(patches, w_mat, scale, shift)

    out = out[:m_real].reshape(n, ho, wo, out_c)
    if nhwc_out:
        return out                       # preferred layout (skips an extra HBM pass)
    return out.transpose(0, 3, 1, 2)     # NCHW for PyTorch parity


def _reference(x_nchw, weight, bias, gamma, beta, stride, padding):
    """Pure-JAX reference (lax conv + train-mode BN + LeakyReLU)."""
    conv = jax.lax.conv_general_dilated(
        x_nchw, weight, window_strides=(stride, stride),
        padding=[(padding, padding), (padding, padding)],
        dimension_numbers=("NCHW", "OIHW", "NCHW"),
    ) + bias.reshape(1, -1, 1, 1)
    mean = conv.mean(axis=(0, 2, 3), keepdims=True)
    var = ((conv - mean) ** 2).mean(axis=(0, 2, 3), keepdims=True)
    y = gamma.reshape(1, -1, 1, 1) * (conv - mean) / jnp.sqrt(var + BN_EPS) \
        + beta.reshape(1, -1, 1, 1)
    return jnp.where(y > 0, y, LEAKY_SLOPE * y)


if __name__ == "__main__":
    # Small shapes consistent with ConvBlock(in_c=4, out_c=8, k_s=3, stride=1, padding=1)
    N, IN_C, OUT_C, H, W = 2, 4, 8, 16, 16
    KH = KW = 3
    STRIDE, PADDING = 1, 1

    key = jax.random.PRNGKey(0)
    kx, kw_ = jax.random.split(key)
    x = jax.random.normal(kx, (N, IN_C, H, W), dtype=jnp.float32)

    # conv.weight: kaiming_normal_(a=0) -> std = sqrt(2 / fan_in); conv.bias: 0
    fan_in = IN_C * KH * KW
    weight = jax.random.normal(kw_, (OUT_C, IN_C, KH, KW), dtype=jnp.float32) \
        * jnp.sqrt(2.0 / fan_in)
    bias = jnp.zeros((OUT_C,), dtype=jnp.float32)
    # NOTE: the reference module zero-inits BN gamma/beta (output would be all-zero);
    # gamma=1 / beta=0.1 here so the fused BN + LeakyReLU path is actually exercised.
    gamma = jnp.ones((OUT_C,), dtype=jnp.float32)
    beta = jnp.full((OUT_C,), 0.1, dtype=jnp.float32)

    ref = _reference(x, weight, bias, gamma, beta, STRIDE, PADDING)

    # tile_m=128 -> 4 M-tiles split over 2 per-core partials, exercising cross-tile and
    # cross-partial stat accumulation.
    # Run 1: default bf16 MXU path (looser tolerance is expected quantization, not a bug).
    out_bf16 = conv_block_forward(x, weight, bias, gamma, beta,
                                  stride=STRIDE, padding=PADDING, tile_m=128,
                                  mxu_dtype=jnp.bfloat16)
    out_bf16 = jax.block_until_ready(out_bf16)
    assert out_bf16.shape == (N, OUT_C, H, W), out_bf16.shape
    assert jnp.allclose(out_bf16, ref, atol=5e-2, rtol=5e-2), \
        float(jnp.max(jnp.abs(out_bf16 - ref)))

    # Run 2: f32 MXU path, tight tolerance.
    out_f32 = conv_block_forward(x, weight, bias, gamma, beta,
                                 stride=STRIDE, padding=PADDING, tile_m=128,
                                 mxu_dtype=jnp.float32)
    out_f32 = jax.block_until_ready(out_f32)
    assert out_f32.shape == (N, OUT_C, H, W), out_f32.shape
    assert jnp.allclose(out_f32, ref, atol=5e-4, rtol=5e-4), \
        float(jnp.max(jnp.abs(out_f32 - ref)))

    print("KERNEL_OK")
</pallas_src>

<mosaic_0001>
module attributes {stable_mosaic.version = 11 : i64} {
  func.func @_conv_stats_kernel(%arg0: i32, %arg1: i32, %arg2: memref<128x128xbf16, #tpu.memory_space<vmem>>, %arg3: memref<128x128xbf16, #tpu.memory_space<vmem>>, %arg4: memref<1x1x128xf32, #tpu.memory_space<vmem>>, %arg5: memref<1x1x128xf32, #tpu.memory_space<vmem>>) attributes {dimension_semantics = [#tpu.dimension_semantics<parallel>, #tpu.dimension_semantics<arbitrary>], iteration_bounds = array<i64: 2, 2>, scalar_prefetch = 0 : i64, scratch_operands = 0 : i64, tpu.core_type = #tpu.core_type<tc>, window_params = [{transform_indices = @transform_0, window_bounds = array<i64: 128, 128>}, {pipeline_mode = #tpu.pipeline_mode<synchronous>, transform_indices = @transform_1, window_bounds = array<i64: 128, 128>}, {transform_indices = @transform_2, window_bounds = array<i64: 1, 1, 128>}, {transform_indices = @transform_3, window_bounds = array<i64: 1, 1, 128>}]} {
    %c0 = arith.constant 0 : index
    %c0_0 = arith.constant 0 : index
    %0 = vector.load %arg2[%c0, %c0_0] : memref<128x128xbf16, #tpu.memory_space<vmem>>, vector<128x128xbf16>
    %c0_1 = arith.constant 0 : index
    %c0_2 = arith.constant 0 : index
    %1 = vector.load %arg3[%c0_1, %c0_2] : memref<128x128xbf16, #tpu.memory_space<vmem>>, vector<128x128xbf16>
    %cst = arith.constant dense<0.000000e+00> : vector<128x128xf32>
    %2 = tpu.matmul %0, %1, %cst {dimension_numbers = #tpu.dot_dimension_numbers<[1], [0], [0], [1], [0, 0, 1, 1], [], []>} : vector<128x128xbf16>, vector<128x128xbf16>, vector<128x128xf32> -> vector<128x128xf32>
    %c0_i32 = arith.constant 0 : i32
    %3 = arith.cmpi eq, %arg1, %c0_i32 : i32
    %4 = arith.extui %3 : i1 to i32
    %c0_i32_3 = arith.constant 0 : i32
    %5 = arith.cmpi ne, %4, %c0_i32_3 : i32
    scf.if %5 {
      %cst_18 = arith.constant 0.000000e+00 : f32
      %19 = vector.broadcast %cst_18 : f32 to vector<1x1x128xf32>
      %c0_19 = arith.constant 0 : index
      %c0_20 = arith.constant 0 : index
      %c0_21 = arith.constant 0 : index
      %20 = vector.load %arg4[%c0_19, %c0_20, %c0_21] : memref<1x1x128xf32, #tpu.memory_space<vmem>>, vector<1x1x128xf32>
      tpu.vector_store %arg4[%c0_19, %c0_20, %c0_21], %19 {strides = array<i32>} : memref<1x1x128xf32, #tpu.memory_space<vmem>>, vector<1x1x128xf32>,
      %cst_22 = arith.constant 0.000000e+00 : f32
      %21 = vector.broadcast %cst_22 : f32 to vector<1x1x128xf32>
      %c0_23 = arith.constant 0 : index
      %c0_24 = arith.constant 0 : index
      %c0_25 = arith.constant 0 : index
      %22 = vector.load %arg5[%c0_23, %c0_24, %c0_25] : memref<1x1x128xf32, #tpu.memory_space<vmem>>, vector<1x1x128xf32>
      tpu.vector_store %arg5[%c0_23, %c0_24, %c0_25], %21 {strides = array<i32>} : memref<1x1x128xf32, #tpu.memory_space<vmem>>, vector<1x1x128xf32>,
    } else {
    }
    %c0_4 = arith.constant 0 : index
    %c0_5 = arith.constant 0 : index
    %c0_6 = arith.constant 0 : index
    %6 = vector.load %arg4[%c0_4, %c0_5, %c0_6] : memref<1x1x128xf32, #tpu.memory_space<vmem>>, vector<1x1x128xf32>
    %cst_7 = arith.constant dense<0.000000e+00> : vector<128xf32>
    %7 = vector.multi_reduction <add>, %2, %cst_7 [0] : vector<128x128xf32> to vector<128xf32>
    %8 = vector.shape_cast %7 : vector<128xf32> to vector<1x128xf32>
    %9 = vector.shape_cast %8 : vector<1x128xf32> to vector<1x1x128xf32>
    %10 = arith.addf %6, %9 : vector<1x1x128xf32>
    %c0_8 = arith.constant 0 : index
    %c0_9 = arith.constant 0 : index
    %c0_10 = arith.constant 0 : index
    %11 = vector.load %arg4[%c0_8, %c0_9, %c0_10] : memref<1x1x128xf32, #tpu.memory_space<vmem>>, vector<1x1x128xf32>
    tpu.vector_store %arg4[%c0_8, %c0_9, %c0_10], %10 {strides = array<i32>} : memref<1x1x128xf32, #tpu.memory_space<vmem>>, vector<1x1x128xf32>,
    %c0_11 = arith.constant 0 : index
    %c0_12 = arith.constant 0 : index
    %c0_13 = arith.constant 0 : index
    %12 = vector.load %arg5[%c0_11, %c0_12, %c0_13] : memref<1x1x128xf32, #tpu.memory_space<vmem>>, vector<1x1x128xf32>
    %13 = arith.mulf %2, %2 : vector<128x128xf32>
    %cst_14 = arith.constant dense<0.000000e+00> : vector<128xf32>
    %14 = vector.multi_reduction <add>, %13, %cst_14 [0] : vector<128x128xf32> to vector<128xf32>
    %15 = vector.shape_cast %14 : vector<128xf32> to vector<1x128xf32>
    %16 = vector.shape_cast %15 : vector<1x128xf32> to vector<1x1x128xf32>
    %17 = arith.addf %12, %16 : vector<1x1x128xf32>
    %c0_15 = arith.constant 0 : index
    %c0_16 = arith.constant 0 : index
    %c0_17 = arith.constant 0 : index
    %18 = vector.load %arg5[%c0_15, %c0_16, %c0_17] : memref<1x1x128xf32, #tpu.memory_space<vmem>>, vector<1x1x128xf32>
    tpu.vector_store %arg5[%c0_15, %c0_16, %c0_17], %17 {strides = array<i32>} : memref<1x1x128xf32, #tpu.memory_space<vmem>>, vector<1x1x128xf32>,
    return
  }
  func.func @transform_0(%arg0: i32, %arg1: i32) -> (i32, i32) {
    %c2_i32 = arith.constant 2 : i32
    %0 = arith.muli %arg0, %c2_i32 : i32
    %1 = arith.addi %0, %arg1 : i32
    %c0_i32 = arith.constant 0 : i32
    %c0_i32_0 = arith.constant 0 : i32
    return %1, %c0_i32 : i32, i32
  }
  func.func @transform_1(%arg0: i32, %arg1: i32) -> (i32, i32) {
    %c0_i32 = arith.constant 0 : i32
    %c0_i32_0 = arith.constant 0 : i32
    %c0_i32_1 = arith.constant 0 : i32
    return %c0_i32, %c0_i32_0 : i32, i32
  }
  func.func @transform_2(%arg0: i32, %arg1: i32) -> (i32, i32, i32) {
    %c0_i32 = arith.constant 0 : i32
    %c0_i32_0 = arith.constant 0 : i32
    %c0_i32_1 = arith.constant 0 : i32
    return %arg0, %c0_i32, %c0_i32_0 : i32, i32, i32
  }
  func.func @transform_3(%arg0: i32, %arg1: i32) -> (i32, i32, i32) {
    %c0_i32 = arith.constant 0 : i32
    %c0_i32_0 = arith.constant 0 : i32
    %c0_i32_1 = arith.constant 0 : i32
    return %arg0, %c0_i32, %c0_i32_0 : i32, i32, i32
  }
}

module attributes {stable_mosaic.version = 11 : i64} {
  func.func @_conv_bn_lrelu_kernel(%arg0: i32, %arg1: memref<128x128xbf16, #tpu.memory_space<vmem>>, %arg2: memref<128x128xbf16, #tpu.memory_space<vmem>>, %arg3: memref<1x128xf32, #tpu.memory_space<vmem>>, %arg4: memref<1x128xf32, #tpu.memory_space<vmem>>, %arg5: memref<128x8xf32, #tpu.memory_space<vmem>>) attributes {dimension_semantics = [#tpu.dimension_semantics<parallel>], iteration_bounds = array<i64: 4>, scalar_prefetch = 0 : i64, scratch_operands = 0 : i64, tpu.core_type = #tpu.core_type<tc>, window_params = [{transform_indices = @transform_0, window_bounds = array<i64: 128, 128>}, {pipeline_mode = #tpu.pipeline_mode<synchronous>, transform_indices = @transform_1, window_bounds = array<i64: 128, 128>}, {pipeline_mode = #tpu.pipeline_mode<synchronous>, transform_indices = @transform_2, window_bounds = array<i64: 1, 128>}, {pipeline_mode = #tpu.pipeline_mode<synchronous>, transform_indices = @transform_3, window_bounds = array<i64: 1, 128>}, {transform_indices = @transform_4, window_bounds = array<i64: 128, 8>}]} {
    %c0 = arith.constant 0 : index
    %c0_0 = arith.constant 0 : index
    %0 = vector.load %arg1[%c0, %c0_0] : memref<128x128xbf16, #tpu.memory_space<vmem>>, vector<128x128xbf16>
    %c0_1 = arith.constant 0 : index
    %c0_2 = arith.constant 0 : index
    %1 = vector.load %arg2[%c0_1, %c0_2] : memref<128x128xbf16, #tpu.memory_space<vmem>>, vector<128x128xbf16>
    %cst = arith.constant dense<0.000000e+00> : vector<128x128xf32>
    %2 = tpu.matmul %0, %1, %cst {dimension_numbers = #tpu.dot_dimension_numbers<[1], [0], [0], [1], [0, 0, 1, 1], [], []>} : vector<128x128xbf16>, vector<128x128xbf16>, vector<128x128xf32> -> vector<128x128xf32>
    %c0_3 = arith.constant 0 : index
    %c0_4 = arith.constant 0 : index
    %3 = vector.load %arg3[%c0_3, %c0_4] : memref<1x128xf32, #tpu.memory_space<vmem>>, vector<1x128xf32>
    %4 = vector.broadcast %3 : vector<1x128xf32> to vector<128x128xf32>
    %5 = arith.mulf %2, %4 : vector<128x128xf32>
    %c0_5 = arith.constant 0 : index
    %c0_6 = arith.constant 0 : index
    %6 = vector.load %arg4[%c0_5, %c0_6] : memref<1x128xf32, #tpu.memory_space<vmem>>, vector<1x128xf32>
    %7 = vector.broadcast %6 : vector<1x128xf32> to vector<128x128xf32>
    %8 = arith.addf %5, %7 : vector<128x128xf32>
    %cst_7 = arith.constant 0.000000e+00 : f32
    %9 = vector.broadcast %cst_7 : f32 to vector<128x128xf32>
    %10 = arith.cmpf ogt, %8, %9 : vector<128x128xf32>
    %cst_8 = arith.constant 0.00999999977 : f32
    %11 = vector.broadcast %cst_8 : f32 to vector<128x128xf32>
    %12 = arith.mulf %11, %8 : vector<128x128xf32>
    %13 = arith.select %10, %8, %12 : vector<128x128xi1>, vector<128x128xf32>
    %14 = vector.extract_strided_slice %13 {offsets = [0, 0], sizes = [128, 8], strides = [1, 1]} : vector<128x128xf32> to vector<128x8xf32>
    %c0_9 = arith.constant 0 : index
    %c0_10 = arith.constant 0 : index
    %15 = vector.load %arg5[%c0_9, %c0_10] : memref<128x8xf32, #tpu.memory_space<vmem>>, vector<128x8xf32>
    tpu.vector_store %arg5[%c0_9, %c0_10], %14 {strides = array<i32>} : memref<128x8xf32, #tpu.memory_space<vmem>>, vector<128x8xf32>,
    return
  }
  func.func @transform_0(%arg0: i32) -> (i32, i32) {
    %c0_i32 = arith.constant 0 : i32
    %c0_i32_0 = arith.constant 0 : i32
    return %arg0, %c0_i32 : i32, i32
  }
  func.func @transform_1(%arg0: i32) -> (i32, i32) {
    %c0_i32 = arith.constant 0 : i32
    %c0_i32_0 = arith.constant 0 : i32
    %c0_i32_1 = arith.constant 0 : i32
    return %c0_i32, %c0_i32_0 : i32, i32
  }
  func.func @transform_2(%arg0: i32) -> (i32, i32) {
    %c0_i32 = arith.constant 0 : i32
    %c0_i32_0 = arith.constant 0 : i32
    %c0_i32_1 = arith.constant 0 : i32
    return %c0_i32, %c0_i32_0 : i32, i32
  }
  func.func @transform_3(%arg0: i32) -> (i32, i32) {
    %c0_i32 = arith.constant 0 : i32
    %c0_i32_0 = arith.constant 0 : i32
    %c0_i32_1 = arith.constant 0 : i32
    return %c0_i32, %c0_i32_0 : i32, i32
  }
  func.func @transform_4(%arg0: i32) -> (i32, i32) {
    %c0_i32 = arith.constant 0 : i32
    %c0_i32_0 = arith.constant 0 : i32
    return %arg0, %c0_i32 : i32, i32
  }
}

</mosaic_0001>

<llo_original>
// kernel: conv_block_forward.2
$region0: #{conv_block_forward.2}
  #allocation0 [shape = 'u32[]', space=smem, size = 0x4, offset = 0x4, fixed_abs, tag = 'smem constant byte address 0x4 - core index']
  #allocation1 [shape = 'u32[72,128]{1,0:T(1,128)}', space=vmem, size = 0x9000, scoped, tag = 'internal scratch']
  %s0 = inlined_call_operand.vmem [shape: bf16[512,128], index: 0, kind: input, shape index: {}]
  %s1 = inlined_call_operand.vmem [shape: bf16[128,128], index: 1, kind: input, shape index: {}]
  %s2 = inlined_call_operand.vmem [shape: f32[2,1,128], index: 2, kind: output, shape index: {0}]
  %s3 = inlined_call_operand.vmem [shape: f32[2,1,128], index: 3, kind: output, shape index: {1}]
  %4 = xla_tuple %s2, %s3
  %s5 = sld [smem:[#allocation0]]
  $region53: #{conv_block_forward.2} parent=0
    _
  %s7 = ssub.s32 1, %s5
  %s8 = scalar_select 0, %s7, %s5
  loop: start=0, step=1, limit=6
  $region2: #{conv_block_forward.2} parent=0 // loop_pre_header
    _
  $region3: #{conv_block_forward.2} parent=0 // loop_header
    %s10 = sphi 0, %s14
    %p11 = scmp.ge.s32.totalorder %s10, 6
    %s17 = sphi 0, %s29
    %s18 = sphi 0, %s25
    %s19 = sphi 0, %s17
    %s20 = sphi 0, %s18
    %s21 = sphi 0, %s19
    %s22 = sphi 0, %s20
    %s36 = sphi 0, %s38
    %s39 = sphi 0, %s36
    %s40 = sphi 0, %s39
    %s56 = sphi 0, %s40
    %s60 = sphi 0, %s60
    %s62 = sphi 0, %s60
    %s63 = sphi 0, %s62
    %s77 = sphi 0, %s63
    %s83 = sphi 0, %s85
    %s86 = sphi 0, %s83
    %s87 = sphi 0, %s86
    %s103 = sphi 0, %s87
    %s109 = sphi 0, %s111
    %s112 = sphi 0, %s109
    %s113 = sphi 0, %s112
    %s129 = sphi 0, %s113
  $region4: #{conv_block_forward.2} parent=0 // loop_header_branch
    %13 = sbr.rel (%p11) target = $region8
  $region5: #{conv_block_forward.2} parent=0 // loop_body
    %s15 = ssub.s32 %s10, 1
    %s16 = ssub.s32 %s10, 2
    %s23 = sadd.s32 1, %s18
    %p24 = scmp.ge.s32.totalorder %s23, 2
    %s25 = scalar_select %p24, 0, %s23
    %s26 = sadd.s32 1, %s17
    %s27 = scalar_select %p24, %s26, %s17
    %p28 = scmp.ge.s32.totalorder %s27, 2
    %s29 = scalar_select %p28, 0, %s27
    %s30 = smul.u32 %s17, 2
    %s31 = sadd.s32 %s30, %s18
    %s32 = smul.u32 %s29, 2
    %s33 = sadd.s32 %s32, %s25
    %s34 = ssub.s32 %s31, %s33
    %p35 = scmp.eq.s32.totalorder %s34, 0
    %s37 = sadd.s32 %s36, 1
    %s38 = scalar_select %p35, %s36, %s37
    %p41 = pneg %p35
    %p42 = scmp.eq.s32.totalorder %s10, 3
    %p43 = por %p41, %p42
    %p44 = scmp.ne.s32.totalorder %s36, %s39
    %p45 = scmp.eq.s32.totalorder %s10, 0
    %p46 = por %p44, %p45
    %p47 = scmp.ne.s32.totalorder %s36, %s39
    %p48 = scmp.eq.s32.totalorder %s15, 3
    %p49 = por %p47, %p48
    %p50 = scmp.ne.s32.totalorder %s39, %s40
    %p51 = scmp.eq.s32.totalorder %s15, 0
    %p52 = por %p50, %p51
    %p53 = scmp.ne.s32.totalorder %s39, %s40
    %p54 = scmp.eq.s32.totalorder %s16, 3
    %p55 = por %p53, %p54
    %p57 = scmp.ne.s32.totalorder %s40, %s56
    %p58 = scmp.eq.s32.totalorder %s16, 0
    %p59 = por %p57, %p58
    %s61 = sadd.s32 %s60, 1
    %p64 = scmp.eq.s32.totalorder %s10, 3
    %p65 = scmp.ne.s32.totalorder %s60, %s62
    %p66 = scmp.eq.s32.totalorder %s10, 0
    %p67 = por %p65, %p66
    %p68 = scmp.ne.s32.totalorder %s60, %s62
    %p69 = scmp.eq.s32.totalorder %s15, 3
    %p70 = por %p68, %p69
    %p71 = scmp.ne.s32.totalorder %s62, %s63
    %p72 = scmp.eq.s32.totalorder %s15, 0
    %p73 = por %p71, %p72
    %p74 = scmp.ne.s32.totalorder %s62, %s63
    %p75 = scmp.eq.s32.totalorder %s16, 3
    %p76 = por %p74, %p75
    %p78 = scmp.ne.s32.totalorder %s63, %s77
    %p79 = scmp.eq.s32.totalorder %s16, 0
    %p80 = por %p78, %p79
    %s81 = ssub.s32 %s17, %s29
    %p82 = scmp.eq.s32.totalorder %s81, 0
    %s84 = sadd.s32 %s83, 1
    %s85 = scalar_select %p82, %s83, %s84
    %p88 = pneg %p82
    %p89 = scmp.eq.s32.totalorder %s10, 3
    %p90 = por %p88, %p89
    %p91 = scmp.ne.s32.totalorder %s83, %s86
    %p92 = scmp.eq.s32.totalorder %s10, 0
    %p93 = por %p91, %p92
    %p94 = scmp.ne.s32.totalorder %s83, %s86
    %p95 = scmp.eq.s32.totalorder %s15, 3
    %p96 = por %p94, %p95
    %p97 = scmp.ne.s32.totalorder %s86, %s87
    %p98 = scmp.eq.s32.totalorder %s15, 0
    %p99 = por %p97, %p98
    %p100 = scmp.ne.s32.totalorder %s86, %s87
    %p101 = scmp.eq.s32.totalorder %s16, 3
    %p102 = por %p100, %p101
    %p104 = scmp.ne.s32.totalorder %s87, %s103
    %p105 = scmp.eq.s32.totalorder %s16, 0
    %p106 = por %p104, %p105
    %s107 = ssub.s32 %s17, %s29
    %p108 = scmp.eq.s32.totalorder %s107, 0
    %s110 = sadd.s32 %s109, 1
    %s111 = scalar_select %p108, %s109, %s110
    %p114 = pneg %p108
    %p115 = scmp.eq.s32.totalorder %s10, 3
    %p116 = por %p114, %p115
    %p117 = scmp.ne.s32.totalorder %s109, %s112
    %p118 = scmp.eq.s32.totalorder %s10, 0
    %p119 = por %p117, %p118
    %p120 = scmp.ne.s32.totalorder %s109, %s112
    %p121 = scmp.eq.s32.totalorder %s15, 3
    %p122 = por %p120, %p121
    %p123 = scmp.ne.s32.totalorder %s112, %s113
    %p124 = scmp.eq.s32.totalorder %s15, 0
    %p125 = por %p123, %p124
    %p126 = scmp.ne.s32.totalorder %s112, %s113
    %p127 = scmp.eq.s32.totalorder %s16, 3
    %p128 = por %p126, %p127
    %p130 = scmp.ne.s32.totalorder %s113, %s129
    %p131 = scmp.eq.s32.totalorder %s16, 0
    %p132 = por %p130, %p131
    %p133 = scmp.le.s32.totalorder 1, %s10
    %p134 = scmp.lt.s32.totalorder %s10, 5
    %p135 = pnand %p133, %p134
    %p136 = pneg %p135
    // Predicated region
    $region9: #{conv_block_forward.2} parent=5 // pred_check
      _
    $region10: #{conv_block_forward.2} parent=5 // pred_check_branch
      %138 = sbr.rel (%p135) target = $region12
    $region11: #{conv_block_forward.2} parent=5 // pred_region
      %s139 = ssub.s32 %s10, 1
      // Predicated region
      $region13: #{conv_block_forward.2} parent=11 // pred_check
        %p140 = pneg %p73
      $region14: #{conv_block_forward.2} parent=11 // pred_check_branch
        %142 = sbr.rel (%p140) target = $region16
      $region15: #{conv_block_forward.2} parent=11 // pred_region
        _
      $region16: #{conv_block_forward.2} parent=11 // pred_fallthru
        _
    $region12: #{conv_block_forward.2} parent=5 // pred_fallthru
      _
    %p143 = scmp.lt.s32.totalorder %s10, 4
    // Predicated region
    $region17: #{conv_block_forward.2} parent=5 // pred_check
      %p144 = pneg %p143
    $region18: #{conv_block_forward.2} parent=5 // pred_check_branch
      %146 = sbr.rel (%p144) target = $region20
    $region19: #{conv_block_forward.2} parent=5 // pred_region
      // Predicated region
      $region21: #{conv_block_forward.2} parent=19 // pred_check
        %p147 = pneg %p46
      $region22: #{conv_block_forward.2} parent=19 // pred_check_branch
        %149 = sbr.rel (%p147) target = $region24
      $region23: #{conv_block_forward.2} parent=19 // pred_region
        %s150 = smul.u32 %s17, 2
        %s151 = sadd.s32 %s150, %s18
        %s152 = smul.u32 16, %s151
        %p153 = scmp.lt.s32.totalorder %s152, 63
        %s154 = scalar_select %p153, %s152, 63
        %s155 = smul.addr %s154, 4
        %s156 = scalar_lea.vmem %s0, %s155
        %s157 = smul.u32 %s17, 2
        %s158 = sadd.s32 %s157, %s18
        %s159 = smul.u32 16, %s158
      $region24: #{conv_block_forward.2} parent=19 // pred_fallthru
        _
    $region20: #{conv_block_forward.2} parent=5 // pred_fallthru
      _
    %p160 = scmp.le.s32.totalorder 1, %s10
    %p161 = scmp.lt.s32.totalorder %s10, 5
    %p162 = pnand %p160, %p161
    %p163 = pneg %p162
    // Predicated region
    $region25: #{conv_block_forward.2} parent=5 // pred_check
      _
    $region26: #{conv_block_forward.2} parent=5 // pred_check_branch
      %165 = sbr.rel (%p162) target = $region28
    $region27: #{conv_block_forward.2} parent=5 // pred_region
      %s166 = ssub.s32 %s10, 1
      %s167 = smul.u32 %s19, 2
      %s168 = sadd.s32 %s167, %s20
      %s169 = smul.u32 16, %s168
      %p170 = scmp.lt.s32.totalorder %s169, 63
      %s171 = scalar_select %p170, %s169, 63
      %s172 = smul.addr %s171, 4
      %s173 = scalar_lea.vmem %s0, %s172
      %p174 = pneg %p52
      %p175 = pneg %p49
      %p176 = pneg %p73
      %p177 = pneg %p70
      %p178 = pneg %p99
      %p179 = pneg %p96
      %p180 = scmp.lt.s32.totalorder %s19, 1
      %s181 = scalar_select %p180, %s19, 1
      %s182 = scalar_lea.vmem %s2, %s181
      %p183 = pneg %p125
      %p184 = pneg %p122
      %p185 = scmp.lt.s32.totalorder %s19, 1
      %s186 = scalar_select %p185, %s19, 1
      %s187 = scalar_lea.vmem %s3, %s186
      %s188 = smul.u32 %s19, 2
      %s189 = sadd.s32 %s188, %s20
      %s190 = smul.u32 16, %s189
      %p191 = scmp.lt.s32.totalorder %s190, 63
      %s192 = scalar_select %p191, %s190, 63
      %s193 = smul.addr %s192, 4
      %s194 = scalar_lea.vmem %s0, %s193
      %s195 = smul.u32 %s19, 2
      %s196 = sadd.s32 %s195, %s20
      %s197 = smul.u32 16, %s196
      %p198 = scmp.lt.s32.totalorder %s19, 1
      %s199 = scalar_select %p198, %s19, 1
      %s200 = scalar_lea.vmem %s2, %s199
      %p201 = scmp.lt.s32.totalorder %s19, 1
      %s202 = scalar_select %p201, %s19, 1
      %s203 = scalar_lea.vmem %s3, %s202
      %v204 = vld [vmem:[%s194] sm:$0xf]
      %v205 = vld [vmem:[%s194 + $0x4] sm:$0xf]
      %v206 = vld [vmem:[%s194 + $0x8] sm:$0xf]
      %v207 = vld [vmem:[%s194 + $0xc] sm:$0xf]
      %v208 = vld [vmem:[%s194 + $0x10] sm:$0xf]
      %v209 = vld [vmem:[%s194 + $0x14] sm:$0xf]
      %v210 = vld [vmem:[%s194 + $0x18] sm:$0xf]
      %v211 = vld [vmem:[%s194 + $0x1c] sm:$0xf]
      %v212 = vld [vmem:[%s194 + $0x20] sm:$0xf]
      %v213 = vld [vmem:[%s194 + $0x24] sm:$0xf]
      %v214 = vld [vmem:[%s194 + $0x28] sm:$0xf]
      %v215 = vld [vmem:[%s194 + $0x2c] sm:$0xf]
      %v216 = vld [vmem:[%s194 + $0x30] sm:$0xf]
      %v217 = vld [vmem:[%s194 + $0x34] sm:$0xf]
      %v218 = vld [vmem:[%s194 + $0x38] sm:$0xf]
      %v219 = vld [vmem:[%s194 + $0x3c] sm:$0xf]
      %v220 = vld [vmem:[%s1] sm:$0xf]
      %v221 = vld [vmem:[%s1 + $0x4] sm:$0xf]
      %v222 = vld [vmem:[%s1 + $0x8] sm:$0xf]
      %v223 = vld [vmem:[%s1 + $0xc] sm:$0xf]
      %v224 = vld [vmem:[%s1 + $0x10] sm:$0xf]
      %v225 = vld [vmem:[%s1 + $0x14] sm:$0xf]
      %v226 = vld [vmem:[%s1 + $0x18] sm:$0xf]
      %v227 = vld [vmem:[%s1 + $0x1c] sm:$0xf]
      %v228 = vld [vmem:[%s1 + $0x20] sm:$0xf]
      %v229 = vld [vmem:[%s1 + $0x24] sm:$0xf]
      %v230 = vld [vmem:[%s1 + $0x28] sm:$0xf]
      %v231 = vld [vmem:[%s1 + $0x2c] sm:$0xf]
      %v232 = vld [vmem:[%s1 + $0x30] sm:$0xf]
      %v233 = vld [vmem:[%s1 + $0x34] sm:$0xf]
      %v234 = vld [vmem:[%s1 + $0x38] sm:$0xf]
      %v235 = vld [vmem:[%s1 + $0x3c] sm:$0xf]
      %v252 = vunpack.c.l.b16 %v204
      %v253 = vunpack.c.l.b16 %v205
      %v254 = vunpack.c.l.b16 %v206
      %v255 = vunpack.c.l.b16 %v207
      %v256 = vunpack.c.l.b16 %v208
      %v257 = vunpack.c.l.b16 %v209
      %v258 = vunpack.c.l.b16 %v210
      %v259 = vunpack.c.l.b16 %v211
      %v260 = vunpack.c.l.b16 %v212
      %v261 = vunpack.c.l.b16 %v213
      %v262 = vunpack.c.l.b16 %v214
      %v263 = vunpack.c.l.b16 %v215
      %v264 = vunpack.c.l.b16 %v216
      %v265 = vunpack.c.l.b16 %v217
      %v266 = vunpack.c.l.b16 %v218
      %v267 = vunpack.c.l.b16 %v219
      %v268 = vpack.c.b16 %v253, %v252
      %v269 = vpack.c.b16 %v255, %v254
      %v270 = vpack.c.b16 %v257, %v256
      %v271 = vpack.c.b16 %v259, %v258
      %v272 = vpack.c.b16 %v261, %v260
      %v273 = vpack.c.b16 %v263, %v262
      %v274 = vpack.c.b16 %v265, %v264
      %v275 = vpack.c.b16 %v267, %v266
      %v300 = vunpack.c.l.b16 %v220
      %v301 = vunpack.c.l.b16 %v221
      %v302 = vunpack.c.l.b16 %v222
      %v303 = vunpack.c.l.b16 %v223
      %v304 = vunpack.c.l.b16 %v224
      %v305 = vunpack.c.l.b16 %v225
      %v306 = vunpack.c.l.b16 %v226
      %v307 = vunpack.c.l.b16 %v227
      %v308 = vunpack.c.l.b16 %v228
      %v309 = vunpack.c.l.b16 %v229
      %v310 = vunpack.c.l.b16 %v230
      %v311 = vunpack.c.l.b16 %v231
      %v312 = vunpack.c.l.b16 %v232
      %v313 = vunpack.c.l.b16 %v233
      %v314 = vunpack.c.l.b16 %v234
      %v315 = vunpack.c.l.b16 %v235
      %v316 = vpack.c.b16 %v301, %v300
      %v317 = vpack.c.b16 %v303, %v302
      %v318 = vpack.c.b16 %v305, %v304
      %v319 = vpack.c.b16 %v307, %v306
      %v320 = vpack.c.b16 %v309, %v308
      %v321 = vpack.c.b16 %v311, %v310
      %v322 = vpack.c.b16 %v313, %v312
      %v323 = vpack.c.b16 %v315, %v314
      %332 = vmatpush.bf16.msra.mxu0 %v323
      %333 = vmatpush.bf16.msra.mxu0 %v322
      %334 = vmatpush.bf16.msra.mxu0 %v321
      %335 = vmatpush.bf16.msra.mxu0 %v320
      %336 = vmatpush.bf16.msra.mxu0 %v319
      %337 = vmatpush.bf16.msra.mxu0 %v318
      %338 = vmatpush.bf16.msra.mxu0 %v317
      %339 = vmatpush.bf16.msra.mxu0 %v316
      %340 = vmatmul.bf16.gmra.mxu0 %v268
      %v341 = vpop.f32.mrf.mxu0
      %v342 = vadd.f32 0.0, %v341
      %v343 = vpop.f32.mrf.mxu0
      %v344 = vadd.f32 0.0, %v343
      %345 = vmatmul.bf16.gmra.mxu0 %v269
      %v346 = vpop.f32.mrf.mxu0
      %v347 = vadd.f32 0.0, %v346
      %v348 = vpop.f32.mrf.mxu0
      %v349 = vadd.f32 0.0, %v348
      %350 = vmatmul.bf16.gmra.mxu0 %v270
      %v351 = vpop.f32.mrf.mxu0
      %v352 = vadd.f32 0.0, %v351
      %v353 = vpop.f32.mrf.mxu0
      %v354 = vadd.f32 0.0, %v353
      %355 = vmatmul.bf16.gmra.mxu0 %v271
      %v356 = vpop.f32.mrf.mxu0
      %v357 = vadd.f32 0.0, %v356
      %v358 = vpop.f32.mrf.mxu0
      %v359 = vadd.f32 0.0, %v358
      %360 = vmatmul.bf16.gmra.mxu0 %v272
      %v361 = vpop.f32.mrf.mxu0
      %v362 = vadd.f32 0.0, %v361
      %v363 = vpop.f32.mrf.mxu0
      %v364 = vadd.f32 0.0, %v363
      %365 = vmatmul.bf16.gmra.mxu0 %v273
      %v366 = vpop.f32.mrf.mxu0
      %v367 = vadd.f32 0.0, %v366
      %v368 = vpop.f32.mrf.mxu0
      %v369 = vadd.f32 0.0, %v368
      %370 = vmatmul.bf16.gmra.mxu0 %v274
      %v371 = vpop.f32.mrf.mxu0
      %v372 = vadd.f32 0.0, %v371
      %v373 = vpop.f32.mrf.mxu0
      %v374 = vadd.f32 0.0, %v373
      %375 = vmatmul.bf16.gmra.mxu0 %v275
      %v376 = vpop.f32.mrf.mxu0
      %v377 = vadd.f32 0.0, %v376
      %v378 = vpop.f32.mrf.mxu0
      %v379 = vadd.f32 0.0, %v378
      %380 = vdwg.mxu0
      %p381 = scmp.eq.s32.totalorder %s20, 0
      // Predicated region
      $region29: #{conv_block_forward.2} parent=27 // pred_check
        %p382 = pneg %p381
      $region30: #{conv_block_forward.2} parent=27 // pred_check_branch
        %384 = sbr.rel (%p382) target = $region32
      $region31: #{conv_block_forward.2} parent=27 // pred_region
        %385 = vst [vmem:[%s200] sm:$0x1] 0.0
        %386 = vst [vmem:[%s203] sm:$0x1] 0.0
      $region32: #{conv_block_forward.2} parent=27 // pred_fallthru
        _
      %v387 = vld [vmem:[%s200] sm:$0x1]
      %v388 = vadd.f32 %v342, %v344
      %v389 = vadd.f32 %v388, %v347
      %v390 = vadd.f32 %v389, %v349
      %v391 = vadd.f32 %v390, %v352
      %v392 = vadd.f32 %v391, %v354
      %v393 = vadd.f32 %v392, %v357
      %v394 = vadd.f32 %v393, %v359
      %v395 = vadd.f32 %v394, %v362
      %v396 = vadd.f32 %v395, %v364
      %v397 = vadd.f32 %v396, %v367
      %v398 = vadd.f32 %v397, %v369
      %v399 = vadd.f32 %v398, %v372
      %v400 = vadd.f32 %v399, %v374
      %v401 = vadd.f32 %v400, %v377
      %v402 = vadd.f32 %v401, %v379
      %v403 = vrot.slane %v402, 4
      %v404 = vadd.f32 %v402, %v403
      %v405 = vrot.slane %v404, 2
      %v406 = vadd.f32 %v404, %v405
      %v407 = vrot.slane %v406, 1
      %v408 = vadd.f32 %v406, %v407
      %v409 = vadd.f32 %v387, %v408
      %410 = vst [vmem:[%s200] sm:$0x1] %v409
      %v411 = vld [vmem:[%s203] sm:$0x1]
      %v412 = vmul.f32 %v342, %v342
      %v413 = vmul.f32 %v344, %v344
      %v414 = vmul.f32 %v347, %v347
      %v415 = vmul.f32 %v349, %v349
      %v416 = vmul.f32 %v352, %v352
      %v417 = vmul.f32 %v354, %v354
      %v418 = vmul.f32 %v357, %v357
      %v419 = vmul.f32 %v359, %v359
      %v420 = vmul.f32 %v362, %v362
      %v421 = vmul.f32 %v364, %v364
      %v422 = vmul.f32 %v367, %v367
      %v423 = vmul.f32 %v369, %v369
      %v424 = vmul.f32 %v372, %v372
      %v425 = vmul.f32 %v374, %v374
      %v426 = vmul.f32 %v377, %v377
      %v427 = vmul.f32 %v379, %v379
      %v428 = vadd.f32 %v412, %v413
      %v429 = vadd.f32 %v428, %v414
      %v430 = vadd.f32 %v429, %v415
      %v431 = vadd.f32 %v430, %v416
      %v432 = vadd.f32 %v431, %v417
      %v433 = vadd.f32 %v432, %v418
      %v434 = vadd.f32 %v433, %v419
      %v435 = vadd.f32 %v434, %v420
      %v436 = vadd.f32 %v435, %v421
      %v437 = vadd.f32 %v436, %v422
      %v438 = vadd.f32 %v437, %v423
      %v439 = vadd.f32 %v438, %v424
      %v440 = vadd.f32 %v439, %v425
      %v441 = vadd.f32 %v440, %v426
      %v442 = vadd.f32 %v441, %v427
      %v443 = vrot.slane %v442, 4
      %v444 = vadd.f32 %v442, %v443
      %v445 = vrot.slane %v444, 2
      %v446 = vadd.f32 %v444, %v445
      %v447 = vrot.slane %v446, 1
      %v448 = vadd.f32 %v446, %v447
      %v449 = vadd.f32 %v411, %v448
      %450 = vst [vmem:[%s203] sm:$0x1] %v449
      %p451 = scmp.lt.s32.totalorder %s19, 1
      %s452 = scalar_select %p451, %s19, 1
      %s453 = scalar_lea.vmem %s2, %s452
      %p454 = scmp.lt.s32.totalorder %s19, 1
      %s455 = scalar_select %p454, %s19, 1
      %s456 = scalar_lea.vmem %s3, %s455
      // Predicated region
      $region33: #{conv_block_forward.2} parent=27 // pred_check
        %p457 = pneg %p96
      $region34: #{conv_block_forward.2} parent=27 // pred_check_branch
        %459 = sbr.rel (%p457) target = $region36
      $region35: #{conv_block_forward.2} parent=27 // pred_region
        _
      $region36: #{conv_block_forward.2} parent=27 // pred_fallthru
        _
      // Predicated region
      $region37: #{conv_block_forward.2} parent=27 // pred_check
        %p460 = pneg %p122
      $region38: #{conv_block_forward.2} parent=27 // pred_check_branch
        %462 = sbr.rel (%p460) target = $region40
      $region39: #{conv_block_forward.2} parent=27 // pred_region
        _
      $region40: #{conv_block_forward.2} parent=27 // pred_fallthru
        _
    $region28: #{conv_block_forward.2} parent=5 // pred_fallthru
      _
    %p463 = scmp.le.s32.totalorder 2, %s10
    // Predicated region
    $region41: #{conv_block_forward.2} parent=5 // pred_check
      %p464 = pneg %p463
    $region42: #{conv_block_forward.2} parent=5 // pred_check_branch
      %466 = sbr.rel (%p464) target = $region44
    $region43: #{conv_block_forward.2} parent=5 // pred_region
      %s467 = ssub.s32 %s10, 2
      // Predicated region
      $region45: #{conv_block_forward.2} parent=43 // pred_check
        %p468 = pneg %p102
      $region46: #{conv_block_forward.2} parent=43 // pred_check_branch
        %470 = sbr.rel (%p468) target = $region48
      $region47: #{conv_block_forward.2} parent=43 // pred_region
        %p471 = scmp.lt.s32.totalorder %s21, 1
        %s472 = scalar_select %p471, %s21, 1
        %s473 = scalar_lea.vmem %s2, %s472
      $region48: #{conv_block_forward.2} parent=43 // pred_fallthru
        _
      // Predicated region
      $region49: #{conv_block_forward.2} parent=43 // pred_check
        %p474 = pneg %p128
      $region50: #{conv_block_forward.2} parent=43 // pred_check_branch
        %476 = sbr.rel (%p474) target = $region52
      $region51: #{conv_block_forward.2} parent=43 // pred_region
        %p477 = scmp.lt.s32.totalorder %s21, 1
        %s478 = scalar_select %p477, %s21, 1
        %s479 = scalar_lea.vmem %s3, %s478
      $region52: #{conv_block_forward.2} parent=43 // pred_fallthru
        _
    $region44: #{conv_block_forward.2} parent=5 // pred_fallthru
      _
  $region6: #{conv_block_forward.2} parent=0 // loop_footer
    %s14 = sadd.s32 1, %s10
  $region7: #{conv_block_forward.2} parent=0 // loop_footer_branch
    %9 = sbr.rel target = $region3
  $region8: #{conv_block_forward.2} parent=0 // loop_exit
    _

// kernel: conv_block_forward.3
$region0: #{conv_block_forward.3}
  #allocation0 [shape = 'u32[]', space=smem, size = 0x4, offset = 0x4, fixed_abs, tag = 'smem constant byte address 0x4 - core index']
  #allocation1 [shape = 'u32[72,128]{1,0:T(1,128)}', space=vmem, size = 0x9000, scoped, tag = 'internal scratch']
  %s0 = inlined_call_operand.vmem [shape: bf16[512,128], index: 0, kind: input, shape index: {}]
  %s1 = inlined_call_operand.vmem [shape: bf16[128,128], index: 1, kind: input, shape index: {}]
  %s2 = inlined_call_operand.vmem [shape: f32[1,128], index: 2, kind: input, shape index: {}]
  %s3 = inlined_call_operand.vmem [shape: f32[1,128], index: 3, kind: input, shape index: {}]
  %s4 = inlined_call_operand.vmem [shape: f32[512,8], index: 4, kind: output, shape index: {}]
  %s5 = sld [smem:[#allocation0]]
  $region49: #{conv_block_forward.3} parent=0
    _
  %s7 = ssub.s32 1, %s5
  %s8 = scalar_select 0, %s7, %s5
  loop: start=0, step=1, limit=6
  $region2: #{conv_block_forward.3} parent=0 // loop_pre_header
    _
  $region3: #{conv_block_forward.3} parent=0 // loop_header
    %s10 = sphi 0, %s14
    %p11 = scmp.ge.s32.totalorder %s10, 6
    %s20 = sphi 0, %s22
    %s23 = sphi 0, %s20
    %s24 = sphi 0, %s23
    %s40 = sphi 0, %s24
    %s44 = sphi 0, %s44
    %s46 = sphi 0, %s44
    %s47 = sphi 0, %s46
    %s61 = sphi 0, %s47
    %s65 = sphi 0, %s65
    %s67 = sphi 0, %s65
    %s68 = sphi 0, %s67
    %s82 = sphi 0, %s68
    %s86 = sphi 0, %s86
    %s88 = sphi 0, %s86
    %s89 = sphi 0, %s88
    %s103 = sphi 0, %s89
    %s109 = sphi 0, %s111
    %s112 = sphi 0, %s109
    %s113 = sphi 0, %s112
    %s129 = sphi 0, %s113
  $region4: #{conv_block_forward.3} parent=0 // loop_header_branch
    %13 = sbr.rel (%p11) target = $region8
  $region5: #{conv_block_forward.3} parent=0 // loop_body
    %s15 = ssub.s32 %s10, 1
    %s16 = ssub.s32 %s10, 2
    %s17 = sadd.s32 %s10, 1
    %s18 = ssub.s32 %s10, %s17
    %p19 = scmp.eq.s32.totalorder %s18, 0
    %s21 = sadd.s32 %s20, 1
    %s22 = scalar_select %p19, %s20, %s21
    %p25 = pneg %p19
    %p26 = scmp.eq.s32.totalorder %s10, 3
    %p27 = por %p25, %p26
    %p28 = scmp.ne.s32.totalorder %s20, %s23
    %p29 = scmp.eq.s32.totalorder %s10, 0
    %p30 = por %p28, %p29
    %p31 = scmp.ne.s32.totalorder %s20, %s23
    %p32 = scmp.eq.s32.totalorder %s15, 3
    %p33 = por %p31, %p32
    %p34 = scmp.ne.s32.totalorder %s23, %s24
    %p35 = scmp.eq.s32.totalorder %s15, 0
    %p36 = por %p34, %p35
    %p37 = scmp.ne.s32.totalorder %s23, %s24
    %p38 = scmp.eq.s32.totalorder %s16, 3
    %p39 = por %p37, %p38
    %p41 = scmp.ne.s32.totalorder %s24, %s40
    %p42 = scmp.eq.s32.totalorder %s16, 0
    %p43 = por %p41, %p42
    %s45 = sadd.s32 %s44, 1
    %p48 = scmp.eq.s32.totalorder %s10, 3
    %p49 = scmp.ne.s32.totalorder %s44, %s46
    %p50 = scmp.eq.s32.totalorder %s10, 0
    %p51 = por %p49, %p50
    %p52 = scmp.ne.s32.totalorder %s44, %s46
    %p53 = scmp.eq.s32.totalorder %s15, 3
    %p54 = por %p52, %p53
    %p55 = scmp.ne.s32.totalorder %s46, %s47
    %p56 = scmp.eq.s32.totalorder %s15, 0
    %p57 = por %p55, %p56
    %p58 = scmp.ne.s32.totalorder %s46, %s47
    %p59 = scmp.eq.s32.totalorder %s16, 3
    %p60 = por %p58, %p59
    %p62 = scmp.ne.s32.totalorder %s47, %s61
    %p63 = scmp.eq.s32.totalorder %s16, 0
    %p64 = por %p62, %p63
    %s66 = sadd.s32 %s65, 1
    %p69 = scmp.eq.s32.totalorder %s10, 3
    %p70 = scmp.ne.s32.totalorder %s65, %s67
    %p71 = scmp.eq.s32.totalorder %s10, 0
    %p72 = por %p70, %p71
    %p73 = scmp.ne.s32.totalorder %s65, %s67
    %p74 = scmp.eq.s32.totalorder %s15, 3
    %p75 = por %p73, %p74
    %p76 = scmp.ne.s32.totalorder %s67, %s68
    %p77 = scmp.eq.s32.totalorder %s15, 0
    %p78 = por %p76, %p77
    %p79 = scmp.ne.s32.totalorder %s67, %s68
    %p80 = scmp.eq.s32.totalorder %s16, 3
    %p81 = por %p79, %p80
    %p83 = scmp.ne.s32.totalorder %s68, %s82
    %p84 = scmp.eq.s32.totalorder %s16, 0
    %p85 = por %p83, %p84
    %s87 = sadd.s32 %s86, 1
    %p90 = scmp.eq.s32.totalorder %s10, 3
    %p91 = scmp.ne.s32.totalorder %s86, %s88
    %p92 = scmp.eq.s32.totalorder %s10, 0
    %p93 = por %p91, %p92
    %p94 = scmp.ne.s32.totalorder %s86, %s88
    %p95 = scmp.eq.s32.totalorder %s15, 3
    %p96 = por %p94, %p95
    %p97 = scmp.ne.s32.totalorder %s88, %s89
    %p98 = scmp.eq.s32.totalorder %s15, 0
    %p99 = por %p97, %p98
    %p100 = scmp.ne.s32.totalorder %s88, %s89
    %p101 = scmp.eq.s32.totalorder %s16, 3
    %p102 = por %p100, %p101
    %p104 = scmp.ne.s32.totalorder %s89, %s103
    %p105 = scmp.eq.s32.totalorder %s16, 0
    %p106 = por %p104, %p105
    %s107 = ssub.s32 %s10, %s17
    %p108 = scmp.eq.s32.totalorder %s107, 0
    %s110 = sadd.s32 %s109, 1
    %s111 = scalar_select %p108, %s109, %s110
    %p114 = pneg %p108
    %p115 = scmp.eq.s32.totalorder %s10, 3
    %p116 = por %p114, %p115
    %p117 = scmp.ne.s32.totalorder %s109, %s112
    %p118 = scmp.eq.s32.totalorder %s10, 0
    %p119 = por %p117, %p118
    %p120 = scmp.ne.s32.totalorder %s109, %s112
    %p121 = scmp.eq.s32.totalorder %s15, 3
    %p122 = por %p120, %p121
    %p123 = scmp.ne.s32.totalorder %s112, %s113
    %p124 = scmp.eq.s32.totalorder %s15, 0
    %p125 = por %p123, %p124
    %p126 = scmp.ne.s32.totalorder %s112, %s113
    %p127 = scmp.eq.s32.totalorder %s16, 3
    %p128 = por %p126, %p127
    %p130 = scmp.ne.s32.totalorder %s113, %s129
    %p131 = scmp.eq.s32.totalorder %s16, 0
    %p132 = por %p130, %p131
    %p133 = scmp.le.s32.totalorder 1, %s10
    %p134 = scmp.lt.s32.totalorder %s10, 5
    %p135 = pnand %p133, %p134
    %p136 = pneg %p135
    // Predicated region
    $region9: #{conv_block_forward.3} parent=5 // pred_check
      _
    $region10: #{conv_block_forward.3} parent=5 // pred_check_branch
      %138 = sbr.rel (%p135) target = $region12
    $region11: #{conv_block_forward.3} parent=5 // pred_region
      %s139 = ssub.s32 %s10, 1
      // Predicated region
      $region13: #{conv_block_forward.3} parent=11 // pred_check
        %p140 = pneg %p57
      $region14: #{conv_block_forward.3} parent=11 // pred_check_branch
        %142 = sbr.rel (%p140) target = $region16
      $region15: #{conv_block_forward.3} parent=11 // pred_region
        _
      $region16: #{conv_block_forward.3} parent=11 // pred_fallthru
        _
      // Predicated region
      $region17: #{conv_block_forward.3} parent=11 // pred_check
        %p143 = pneg %p78
      $region18: #{conv_block_forward.3} parent=11 // pred_check_branch
        %145 = sbr.rel (%p143) target = $region20
      $region19: #{conv_block_forward.3} parent=11 // pred_region
        _
      $region20: #{conv_block_forward.3} parent=11 // pred_fallthru
        _
      // Predicated region
      $region21: #{conv_block_forward.3} parent=11 // pred_check
        %p146 = pneg %p99
      $region22: #{conv_block_forward.3} parent=11 // pred_check_branch
        %148 = sbr.rel (%p146) target = $region24
      $region23: #{conv_block_forward.3} parent=11 // pred_region
        _
      $region24: #{conv_block_forward.3} parent=11 // pred_fallthru
        _
    $region12: #{conv_block_forward.3} parent=5 // pred_fallthru
      _
    %p149 = scmp.lt.s32.totalorder %s10, 4
    // Predicated region
    $region25: #{conv_block_forward.3} parent=5 // pred_check
      %p150 = pneg %p149
    $region26: #{conv_block_forward.3} parent=5 // pred_check_branch
      %152 = sbr.rel (%p150) target = $region28
    $region27: #{conv_block_forward.3} parent=5 // pred_region
      // Predicated region
      $region29: #{conv_block_forward.3} parent=27 // pred_check
        %p153 = pneg %p30
      $region30: #{conv_block_forward.3} parent=27 // pred_check_branch
        %155 = sbr.rel (%p153) target = $region32
      $region31: #{conv_block_forward.3} parent=27 // pred_region
        %s156 = smul.u32 16, %s10
        %p157 = scmp.lt.s32.totalorder %s156, 63
        %s158 = scalar_select %p157, %s156, 63
        %s159 = smul.addr %s158, 4
        %s160 = scalar_lea.vmem %s0, %s159
        %s161 = smul.u32 16, %s10
      $region32: #{conv_block_forward.3} parent=27 // pred_fallthru
        _
    $region28: #{conv_block_forward.3} parent=5 // pred_fallthru
      _
    %p162 = scmp.le.s32.totalorder 1, %s10
    %p163 = scmp.lt.s32.totalorder %s10, 5
    %p164 = pnand %p162, %p163
    %p165 = pneg %p164
    // Predicated region
    $region33: #{conv_block_forward.3} parent=5 // pred_check
      _
    $region34: #{conv_block_forward.3} parent=5 // pred_check_branch
      %167 = sbr.rel (%p164) target = $region36
    $region35: #{conv_block_forward.3} parent=5 // pred_region
      %s168 = ssub.s32 %s10, 1
      %s169 = smul.u32 16, %s15
      %p170 = scmp.lt.s32.totalorder %s169, 63
      %s171 = scalar_select %p170, %s169, 63
      %s172 = smul.addr %s171, 4
      %s173 = scalar_lea.vmem %s0, %s172
      %p174 = pneg %p36
      %p175 = pneg %p33
      %p176 = pneg %p57
      %p177 = pneg %p54
      %p178 = pneg %p78
      %p179 = pneg %p75
      %p180 = pneg %p99
      %p181 = pneg %p96
      %p182 = pneg %p125
      %p183 = pneg %p122
      %s184 = smul.u32 16, %s15
      %p185 = scmp.lt.s32.totalorder %s184, 63
      %s186 = scalar_select %p185, %s184, 63
      %s187 = smul.addr %s186, 8
      %s188 = scalar_lea.vmem %s4, %s187
      %s189 = smul.u32 16, %s15
      %p190 = scmp.lt.s32.totalorder %s189, 63
      %s191 = scalar_select %p190, %s189, 63
      %s192 = smul.addr %s191, 4
      %s193 = scalar_lea.vmem %s0, %s192
      %s194 = smul.u32 16, %s15
      %s195 = smul.u32 16, %s15
      %p196 = scmp.lt.s32.totalorder %s195, 63
      %s197 = scalar_select %p196, %s195, 63
      %s198 = smul.addr %s197, 8
      %s199 = scalar_lea.vmem %s4, %s198
      %s200 = smul.u32 16, %s15
      %v201 = vld [vmem:[%s193] sm:$0xf]
      %v202 = vld [vmem:[%s193 + $0x4] sm:$0xf]
      %v203 = vld [vmem:[%s193 + $0x8] sm:$0xf]
      %v204 = vld [vmem:[%s193 + $0xc] sm:$0xf]
      %v205 = vld [vmem:[%s193 + $0x10] sm:$0xf]
      %v206 = vld [vmem:[%s193 + $0x14] sm:$0xf]
      %v207 = vld [vmem:[%s193 + $0x18] sm:$0xf]
      %v208 = vld [vmem:[%s193 + $0x1c] sm:$0xf]
      %v209 = vld [vmem:[%s193 + $0x20] sm:$0xf]
      %v210 = vld [vmem:[%s193 + $0x24] sm:$0xf]
      %v211 = vld [vmem:[%s193 + $0x28] sm:$0xf]
      %v212 = vld [vmem:[%s193 + $0x2c] sm:$0xf]
      %v213 = vld [vmem:[%s193 + $0x30] sm:$0xf]
      %v214 = vld [vmem:[%s193 + $0x34] sm:$0xf]
      %v215 = vld [vmem:[%s193 + $0x38] sm:$0xf]
      %v216 = vld [vmem:[%s193 + $0x3c] sm:$0xf]
      %v217 = vld [vmem:[%s1] sm:$0xf]
      %v218 = vld [vmem:[%s1 + $0x4] sm:$0xf]
      %v219 = vld [vmem:[%s1 + $0x8] sm:$0xf]
      %v220 = vld [vmem:[%s1 + $0xc] sm:$0xf]
      %v221 = vld [vmem:[%s1 + $0x10] sm:$0xf]
      %v222 = vld [vmem:[%s1 + $0x14] sm:$0xf]
      %v223 = vld [vmem:[%s1 + $0x18] sm:$0xf]
      %v224 = vld [vmem:[%s1 + $0x1c] sm:$0xf]
      %v225 = vld [vmem:[%s1 + $0x20] sm:$0xf]
      %v226 = vld [vmem:[%s1 + $0x24] sm:$0xf]
      %v227 = vld [vmem:[%s1 + $0x28] sm:$0xf]
      %v228 = vld [vmem:[%s1 + $0x2c] sm:$0xf]
      %v229 = vld [vmem:[%s1 + $0x30] sm:$0xf]
      %v230 = vld [vmem:[%s1 + $0x34] sm:$0xf]
      %v231 = vld [vmem:[%s1 + $0x38] sm:$0xf]
      %v232 = vld [vmem:[%s1 + $0x3c] sm:$0xf]
      %v249 = vunpack.c.l.b16 %v201
      %v250 = vunpack.c.l.b16 %v202
      %v251 = vunpack.c.l.b16 %v203
      %v252 = vunpack.c.l.b16 %v204
      %v253 = vunpack.c.l.b16 %v205
      %v254 = vunpack.c.l.b16 %v206
      %v255 = vunpack.c.l.b16 %v207
      %v256 = vunpack.c.l.b16 %v208
      %v257 = vunpack.c.l.b16 %v209
      %v258 = vunpack.c.l.b16 %v210
      %v259 = vunpack.c.l.b16 %v211
      %v260 = vunpack.c.l.b16 %v212
      %v261 = vunpack.c.l.b16 %v213
      %v262 = vunpack.c.l.b16 %v214
      %v263 = vunpack.c.l.b16 %v215
      %v264 = vunpack.c.l.b16 %v216
      %v265 = vpack.c.b16 %v250, %v249
      %v266 = vpack.c.b16 %v252, %v251
      %v267 = vpack.c.b16 %v254, %v253
      %v268 = vpack.c.b16 %v256, %v255
      %v269 = vpack.c.b16 %v258, %v257
      %v270 = vpack.c.b16 %v260, %v259
      %v271 = vpack.c.b16 %v262, %v261
      %v272 = vpack.c.b16 %v264, %v263
      %v297 = vunpack.c.l.b16 %v217
      %v298 = vunpack.c.l.b16 %v218
      %v299 = vunpack.c.l.b16 %v219
      %v300 = vunpack.c.l.b16 %v220
      %v301 = vunpack.c.l.b16 %v221
      %v302 = vunpack.c.l.b16 %v222
      %v303 = vunpack.c.l.b16 %v223
      %v304 = vunpack.c.l.b16 %v224
      %v305 = vunpack.c.l.b16 %v225
      %v306 = vunpack.c.l.b16 %v226
      %v307 = vunpack.c.l.b16 %v227
      %v308 = vunpack.c.l.b16 %v228
      %v309 = vunpack.c.l.b16 %v229
      %v310 = vunpack.c.l.b16 %v230
      %v311 = vunpack.c.l.b16 %v231
      %v312 = vunpack.c.l.b16 %v232
      %v313 = vpack.c.b16 %v298, %v297
      %v314 = vpack.c.b16 %v300, %v299
      %v315 = vpack.c.b16 %v302, %v301
      %v316 = vpack.c.b16 %v304, %v303
      %v317 = vpack.c.b16 %v306, %v305
      %v318 = vpack.c.b16 %v308, %v307
      %v319 = vpack.c.b16 %v310, %v309
      %v320 = vpack.c.b16 %v312, %v311
      %329 = vmatpush.bf16.msra.mxu0 %v320
      %330 = vmatpush.bf16.msra.mxu0 %v319
      %331 = vmatpush.bf16.msra.mxu0 %v318
      %332 = vmatpush.bf16.msra.mxu0 %v317
      %333 = vmatpush.bf16.msra.mxu0 %v316
      %334 = vmatpush.bf16.msra.mxu0 %v315
      %335 = vmatpush.bf16.msra.mxu0 %v314
      %336 = vmatpush.bf16.msra.mxu0 %v313
      %337 = vmatmul.bf16.gmra.mxu0 %v265
      %v338 = vpop.f32.mrf.mxu0
      %v339 = vadd.f32 0.0, %v338
      %v340 = vpop.f32.mrf.mxu0
      %v341 = vadd.f32 0.0, %v340
      %342 = vmatmul.bf16.gmra.mxu0 %v266
      %v343 = vpop.f32.mrf.mxu0
      %v344 = vadd.f32 0.0, %v343
      %v345 = vpop.f32.mrf.mxu0
      %v346 = vadd.f32 0.0, %v345
      %347 = vmatmul.bf16.gmra.mxu0 %v267
      %v348 = vpop.f32.mrf.mxu0
      %v349 = vadd.f32 0.0, %v348
      %v350 = vpop.f32.mrf.mxu0
      %v351 = vadd.f32 0.0, %v350
      %352 = vmatmul.bf16.gmra.mxu0 %v268
      %v353 = vpop.f32.mrf.mxu0
      %v354 = vadd.f32 0.0, %v353
      %v355 = vpop.f32.mrf.mxu0
      %v356 = vadd.f32 0.0, %v355
      %357 = vmatmul.bf16.gmra.mxu0 %v269
      %v358 = vpop.f32.mrf.mxu0
      %v359 = vadd.f32 0.0, %v358
      %v360 = vpop.f32.mrf.mxu0
      %v361 = vadd.f32 0.0, %v360
      %362 = vmatmul.bf16.gmra.mxu0 %v270
      %v363 = vpop.f32.mrf.mxu0
      %v364 = vadd.f32 0.0, %v363
      %v365 = vpop.f32.mrf.mxu0
      %v366 = vadd.f32 0.0, %v365
      %367 = vmatmul.bf16.gmra.mxu0 %v271
      %v368 = vpop.f32.mrf.mxu0
      %v369 = vadd.f32 0.0, %v368
      %v370 = vpop.f32.mrf.mxu0
      %v371 = vadd.f32 0.0, %v370
      %372 = vmatmul.bf16.gmra.mxu0 %v272
      %v373 = vpop.f32.mrf.mxu0
      %v374 = vadd.f32 0.0, %v373
      %v375 = vpop.f32.mrf.mxu0
      %v376 = vadd.f32 0.0, %v375
      %377 = vdwg.mxu0
      %v378 = vld [vmem:[%s2] sm:$0x1]
      %v380 = vperm.slane %v378, 0
      %v382 = vmul.f32 %v339, %v380
      %v383 = vmul.f32 %v341, %v380
      %v384 = vmul.f32 %v344, %v380
      %v385 = vmul.f32 %v346, %v380
      %v386 = vmul.f32 %v349, %v380
      %v387 = vmul.f32 %v351, %v380
      %v388 = vmul.f32 %v354, %v380
      %v389 = vmul.f32 %v356, %v380
      %v390 = vmul.f32 %v359, %v380
      %v391 = vmul.f32 %v361, %v380
      %v392 = vmul.f32 %v364, %v380
      %v393 = vmul.f32 %v366, %v380
      %v394 = vmul.f32 %v369, %v380
      %v395 = vmul.f32 %v371, %v380
      %v396 = vmul.f32 %v374, %v380
      %v397 = vmul.f32 %v376, %v380
      %v398 = vld [vmem:[%s3] sm:$0x1]
      %v400 = vperm.slane %v398, 0
      %v402 = vadd.f32 %v382, %v400
      %v403 = vadd.f32 %v383, %v400
      %v404 = vadd.f32 %v384, %v400
      %v405 = vadd.f32 %v385, %v400
      %v406 = vadd.f32 %v386, %v400
      %v407 = vadd.f32 %v387, %v400
      %v408 = vadd.f32 %v388, %v400
      %v409 = vadd.f32 %v389, %v400
      %v410 = vadd.f32 %v390, %v400
      %v411 = vadd.f32 %v391, %v400
      %v412 = vadd.f32 %v392, %v400
      %v413 = vadd.f32 %v393, %v400
      %v414 = vadd.f32 %v394, %v400
      %v415 = vadd.f32 %v395, %v400
      %v416 = vadd.f32 %v396, %v400
      %v417 = vadd.f32 %v397, %v400
      %vm418 = vcmp.gt.f32.partialorder %v402, 0.0
      %vm419 = vcmp.gt.f32.partialorder %v403, 0.0
      %vm420 = vcmp.gt.f32.partialorder %v404, 0.0
      %vm421 = vcmp.gt.f32.partialorder %v405, 0.0
      %vm422 = vcmp.gt.f32.partialorder %v406, 0.0
      %vm423 = vcmp.gt.f32.partialorder %v407, 0.0
      %vm424 = vcmp.gt.f32.partialorder %v408, 0.0
      %vm425 = vcmp.gt.f32.partialorder %v409, 0.0
      %vm426 = vcmp.gt.f32.partialorder %v410, 0.0
      %vm427 = vcmp.gt.f32.partialorder %v411, 0.0
      %vm428 = vcmp.gt.f32.partialorder %v412, 0.0
      %vm429 = vcmp.gt.f32.partialorder %v413, 0.0
      %vm430 = vcmp.gt.f32.partialorder %v414, 0.0
      %vm431 = vcmp.gt.f32.partialorder %v415, 0.0
      %vm432 = vcmp.gt.f32.partialorder %v416, 0.0
      %vm433 = vcmp.gt.f32.partialorder %v417, 0.0
      %v434 = vmul.f32 %v402, 0.01
      %v435 = vmul.f32 %v403, 0.01
      %v436 = vmul.f32 %v404, 0.01
      %v437 = vmul.f32 %v405, 0.01
      %v438 = vmul.f32 %v406, 0.01
      %v439 = vmul.f32 %v407, 0.01
      %v440 = vmul.f32 %v408, 0.01
      %v441 = vmul.f32 %v409, 0.01
      %v442 = vmul.f32 %v410, 0.01
      %v443 = vmul.f32 %v411, 0.01
      %v444 = vmul.f32 %v412, 0.01
      %v445 = vmul.f32 %v413, 0.01
      %v446 = vmul.f32 %v414, 0.01
      %v447 = vmul.f32 %v415, 0.01
      %v448 = vmul.f32 %v416, 0.01
      %v449 = vmul.f32 %v417, 0.01
      %v450 = vsel %vm418, %v402, %v434
      %v451 = vsel %vm419, %v403, %v435
      %v452 = vsel %vm420, %v404, %v436
      %v453 = vsel %vm421, %v405, %v437
      %v454 = vsel %vm422, %v406, %v438
      %v455 = vsel %vm423, %v407, %v439
      %v456 = vsel %vm424, %v408, %v440
      %v457 = vsel %vm425, %v409, %v441
      %v458 = vsel %vm426, %v410, %v442
      %v459 = vsel %vm427, %v411, %v443
      %v460 = vsel %vm428, %v412, %v444
      %v461 = vsel %vm429, %v413, %v445
      %v462 = vsel %vm430, %v414, %v446
      %v463 = vsel %vm431, %v415, %v447
      %v464 = vsel %vm432, %v416, %v448
      %v465 = vsel %vm433, %v417, %v449
      %vm466 = vcmask 64512
      %467 = vst.msk [vmem:[%s199] sm:$0xff] %vm466, %v450
      %468 = vst.msk [vmem:[%s199 + $0x8] sm:$0xff] %vm466, %v451
      %469 = vst.msk [vmem:[%s199 + $0x10] sm:$0xff] %vm466, %v452
      %470 = vst.msk [vmem:[%s199 + $0x18] sm:$0xff] %vm466, %v453
      %471 = vst.msk [vmem:[%s199 + $0x20] sm:$0xff] %vm466, %v454
      %472 = vst.msk [vmem:[%s199 + $0x28] sm:$0xff] %vm466, %v455
      %473 = vst.msk [vmem:[%s199 + $0x30] sm:$0xff] %vm466, %v456
      %474 = vst.msk [vmem:[%s199 + $0x38] sm:$0xff] %vm466, %v457
      %475 = vst.msk [vmem:[%s199 + $0x40] sm:$0xff] %vm466, %v458
      %476 = vst.msk [vmem:[%s199 + $0x48] sm:$0xff] %vm466, %v459
      %477 = vst.msk [vmem:[%s199 + $0x50] sm:$0xff] %vm466, %v460
      %478 = vst.msk [vmem:[%s199 + $0x58] sm:$0xff] %vm466, %v461
      %479 = vst.msk [vmem:[%s199 + $0x60] sm:$0xff] %vm466, %v462
      %480 = vst.msk [vmem:[%s199 + $0x68] sm:$0xff] %vm466, %v463
      %481 = vst.msk [vmem:[%s199 + $0x70] sm:$0xff] %vm466, %v464
      %482 = vst.msk [vmem:[%s199 + $0x78] sm:$0xff] %vm466, %v465
      %s483 = smul.u32 16, %s15
      %p484 = scmp.lt.s32.totalorder %s483, 63
      %s485 = scalar_select %p484, %s483, 63
      %s486 = smul.addr %s485, 8
      %s487 = scalar_lea.vmem %s4, %s486
      // Predicated region
      $region37: #{conv_block_forward.3} parent=35 // pred_check
        %p488 = pneg %p122
      $region38: #{conv_block_forward.3} parent=35 // pred_check_branch
        %490 = sbr.rel (%p488) target = $region40
      $region39: #{conv_block_forward.3} parent=35 // pred_region
        %s491 = smul.u32 16, %s15
      $region40: #{conv_block_forward.3} parent=35 // pred_fallthru
        _
    $region36: #{conv_block_forward.3} parent=5 // pred_fallthru
      _
    %p492 = scmp.le.s32.totalorder 2, %s10
    // Predicated region
    $region41: #{conv_block_forward.3} parent=5 // pred_check
      %p493 = pneg %p492
    $region42: #{conv_block_forward.3} parent=5 // pred_check_branch
      %495 = sbr.rel (%p493) target = $region44
    $region43: #{conv_block_forward.3} parent=5 // pred_region
      %s496 = ssub.s32 %s10, 2
      // Predicated region
      $region45: #{conv_block_forward.3} parent=43 // pred_check
        %p497 = pneg %p128
      $region46: #{conv_block_forward.3} parent=43 // pred_check_branch
        %499 = sbr.rel (%p497) target = $region48
      $region47: #{conv_block_forward.3} parent=43 // pred_region
        %s500 = smul.u32 16, %s16
        %p501 = scmp.lt.s32.totalorder %s500, 63
        %s502 = scalar_select %p501, %s500, 63
        %s503 = smul.addr %s502, 8
        %s504 = scalar_lea.vmem %s4, %s503
      $region48: #{conv_block_forward.3} parent=43 // pred_fallthru
        _
    $region44: #{conv_block_forward.3} parent=5 // pred_fallthru
      _
  $region6: #{conv_block_forward.3} parent=0 // loop_footer
    %s14 = sadd.s32 1, %s10
  $region7: #{conv_block_forward.3} parent=0 // loop_footer_branch
    %9 = sbr.rel target = $region3
  $region8: #{conv_block_forward.3} parent=0 // loop_exit
    _

</llo_original>
